<compile_context>
chip_gen: v5e
topology: v5e:2x2
jax: 0.10.0
libtpu: 0.0.40
codegen_flags: <defaults>
</compile_context>

<pallas_src>
import functools

import jax
import jax.numpy as jnp
from jax.experimental import pallas as pl
from jax.experimental.pallas import tpu as pltpu

_MIB = 1024 * 1024


def _round_up(x, m):
    return ((x + m - 1) // m) * m


def _round_down(x, m):
    return (x // m) * m


def _tpu_vmem_capacity_bytes():
    """Physical VMEM per TensorCore; conservative (v7x-sized) fallback."""
    try:
        info = pltpu.get_tpu_info()
        return int(getattr(info, "vmem_capacity_bytes", 64 * _MIB))
    except Exception:
        return 64 * _MIB


def _control_gate_kernel(x_ref, w_ref, b_ref, enc_ref, out_ref, *, alpha):
    # x_ref  : (tm, K)  strat_input tile
    # w_ref  : (K, N)   weight, already transposed to [in, out] (resident)
    # b_ref  : (1, N)   bias (resident)
    # enc_ref: (tm, N)  encoder_output tile
    # out_ref: (tm, N)
    z = jnp.dot(x_ref[...], w_ref[...], preferred_element_type=jnp.float32)
    gate = jax.nn.sigmoid(z + b_ref[...].astype(jnp.float32))   # f32, exp on EUP
    # Fused residual blend: alpha*enc + (1-alpha)*gate*enc == enc * factor
    factor = alpha + (1.0 - alpha) * gate                       # f32
    enc = enc_ref[...]
    # Keep the blend in the encoder dtype (halves vreg traffic for bf16).
    out_ref[...] = (enc * factor.astype(enc.dtype)).astype(out_ref.dtype)


def control_gate_forward(strat_input, encoder_output, weight, bias,
                         *, alpha=0.5, gate_mode='residual', tm=None):
    """Fused Control_gate forward.

    strat_input:    [M, K]   (K = gate_input_size)
    encoder_output: [M, N]   (N = gate_linear_size)
    weight:         [K, N]   -- NOTE: transpose of nn.Linear.weight ([N, K])
    bias:           [N]
    tm: optional upper bound on the row-tile size (auto-sized by default).
    """
    M, K = strat_input.shape
    Kw, N = weight.shape
    assert Kw == K, "weight must be [gate_input_size, gate_linear_size] (W^T)"
    assert encoder_output.shape == (M, N)
    assert bias.shape == (N,)

    # Non-residual mode is equivalent to alpha == 0 (pure gated output).
    eff_alpha = float(alpha) if gate_mode == 'residual' else 0.0

    x_item = jnp.dtype(strat_input.dtype).itemsize
    enc_item = jnp.dtype(encoder_output.dtype).itemsize
    w_item = jnp.dtype(weight.dtype).itemsize
    b_item = jnp.dtype(bias.dtype).itemsize

    # Sublane alignment: 8 rows for 32-bit dtypes, 16 for sub-32-bit packed rows.
    row_align = 16 if enc_item < 4 else 8

    vmem_phys = _tpu_vmem_capacity_bytes()
    # Small-VMEM chips (<= 64 MiB/core) are the 2-TensorCore generation.
    multi_core = vmem_phys <= 64 * _MIB

    # Streamed HBM bytes per row of the grid: x read + enc read + out write.
    bytes_per_row = K * x_item + 2 * N * enc_item
    # Weight + bias stay resident (same block every step, still double-buffered).
    resident_bytes = 2 * (K * N * w_item + N * b_item)

    # --- Row-tile sizing -------------------------------------------------
    # Target ~2 MiB of streamed traffic per grid step (amortizes the ~0.35 us
    # per-step pipeline overhead; mem-bound kernels hit ~85-90% of roofline).
    target_bytes = 2 * _MIB
    tm_eff = _round_up(max(1, target_bytes // bytes_per_row), row_align)

    # VMEM ceiling: streamed tiles are double-buffered; keep >= 25% headroom.
    vmem_budget = (vmem_phys * 3) // 8          # ~24 MiB on v7x, ~48 MiB on v5e/v6e
    tm_vmem_cap = (vmem_budget - resident_bytes - 2 * _MIB) // (2 * bytes_per_row)
    tm_vmem_cap = max(row_align, _round_down(max(tm_vmem_cap, 0), row_align))
    tm_eff = min(tm_eff, tm_vmem_cap)

    # On 2-TensorCore chips keep >= 4 grid steps (>= 2 per core) when M allows,
    # so the "parallel" M axis actually feeds both cores with double-buffering.
    if multi_core and M >= 4 * row_align:
        tm_core_cap = max(row_align, _round_down(M // 4, row_align))
        tm_eff = min(tm_eff, tm_core_cap)

    # Never bigger than one row-aligned block covering all of M.
    tm_eff = min(tm_eff, _round_up(M, row_align))

    # Explicit user request acts as an upper bound.
    if tm is not None:
        tm_eff = min(tm_eff, max(row_align, _round_down(int(tm), row_align)))

    grid_m = pl.cdiv(M, tm_eff)                 # last block may be partial (masked)

    bias2d = bias.reshape(1, N)
    kernel = functools.partial(_control_gate_kernel, alpha=eff_alpha)

    cost = pl.CostEstimate(
        flops=2 * M * K * N,
        transcendentals=M * N,                   # sigmoid
        bytes_accessed=(M * K * x_item + K * N * w_item + N * b_item
                        + 2 * M * N * enc_item),
    )

    vmem_needed = 2 * tm_eff * bytes_per_row + resident_bytes + 2 * _MIB
    vmem_limit = int(min(max(int(vmem_needed * 1.5), 8 * _MIB),
                         (vmem_phys * 3) // 4))

    # TODO(synk): if gate_linear_size is not a multiple of 128, pad weight/bias
    # columns once at parameter-prep time (keeps output stores lane-dense).

    out = pl.pallas_call(
        kernel,
        out_shape=jax.ShapeDtypeStruct((M, N), encoder_output.dtype),
        grid_spec=pltpu.PrefetchScalarGridSpec(
            num_scalar_prefetch=0,
            grid=(grid_m,),
            in_specs=[
                pl.BlockSpec((tm_eff, K), lambda i: (i, 0)),  # strat_input tile
                pl.BlockSpec((K, N), lambda i: (0, 0)),       # weight (resident)
                pl.BlockSpec((1, N), lambda i: (0, 0)),       # bias   (resident)
                pl.BlockSpec((tm_eff, N), lambda i: (i, 0)),  # encoder_output tile
            ],
            out_specs=pl.BlockSpec((tm_eff, N), lambda i: (i, 0)),
        ),
        compiler_params=pltpu.CompilerParams(
            dimension_semantics=("parallel",),
            vmem_limit_bytes=vmem_limit,
        ),
        cost_estimate=cost,
    )(strat_input, weight, bias2d, encoder_output)

    return out


def _reference(strat_input, encoder_output, weight, bias, alpha=0.5,
               gate_mode='residual'):
    gate = jax.nn.sigmoid(strat_input @ weight + bias)
    gated = gate * encoder_output
    if gate_mode == 'residual':
        return alpha * encoder_output + (1 - alpha) * gated
    return gated


if __name__ == "__main__":
    key = jax.random.PRNGKey(0)
    k_x, k_enc, k_w, k_b = jax.random.split(key, 4)

    # --- Test 1: small shapes consistent with the module -----------------
    # batch=2, seq=8 -> M=16 rows, gate_input_size=32, gate_linear_size=128
    batch, seq = 2, 8
    gate_input_size = 32
    gate_linear_size = 128
    alpha = 0.5
    M = batch * seq

    strat_input = jax.random.normal(k_x, (M, gate_input_size), jnp.float32)
    encoder_output = jax.random.normal(k_enc, (M, gate_linear_size), jnp.float32)

    bound = 1.0 / (gate_input_size ** 0.5)
    weight = jax.random.uniform(
        k_w, (gate_input_size, gate_linear_size), jnp.float32,
        minval=-bound, maxval=bound)
    bias = jax.random.uniform(
        k_b, (gate_linear_size,), jnp.float32, minval=-bound, maxval=bound)

    out = control_gate_forward(strat_input, encoder_output, weight, bias,
                               alpha=alpha, gate_mode='residual')
    out = jax.block_until_ready(out)
    ref = _reference(strat_input, encoder_output, weight, bias, alpha=alpha)
    assert jnp.allclose(out, ref, atol=1e-5, rtol=1e-5), "mismatch (test 1)"

    # Non-residual ('gated') mode.
    out_g = control_gate_forward(strat_input, encoder_output, weight, bias,
                                 alpha=alpha, gate_mode='gated')
    out_g = jax.block_until_ready(out_g)
    ref_g = _reference(strat_input, encoder_output, weight, bias, alpha=alpha,
                       gate_mode='gated')
    assert jnp.allclose(out_g, ref_g, atol=1e-5, rtol=1e-5), "mismatch (test 1b)"

    # --- Test 2: ragged M (exercises masked partial block, no padding) ---
    M2 = 100                                  # not a multiple of the tile
    x2 = jax.random.normal(jax.random.PRNGKey(1), (M2, gate_input_size), jnp.float32)
    enc2 = jax.random.normal(jax.random.PRNGKey(2), (M2, gate_linear_size), jnp.float32)
    out2 = control_gate_forward(x2, enc2, weight, bias, alpha=alpha,
                                gate_mode='residual', tm=64)
    out2 = jax.block_until_ready(out2)
    ref2 = _reference(x2, enc2, weight, bias, alpha=alpha)
    assert jnp.allclose(out2, ref2, atol=1e-5, rtol=1e-5), "mismatch (test 2)"

    # --- Test 3: bf16 path (16-row alignment, bf16 blend) -----------------
    M3 = 48
    x3 = jax.random.normal(jax.random.PRNGKey(3), (M3, gate_input_size),
                           jnp.float32).astype(jnp.bfloat16)
    enc3 = jax.random.normal(jax.random.PRNGKey(4), (M3, gate_linear_size),
                             jnp.float32).astype(jnp.bfloat16)
    w3 = weight.astype(jnp.bfloat16)
    b3 = bias.astype(jnp.bfloat16)
    out3 = control_gate_forward(x3, enc3, w3, b3, alpha=0.3,
                                gate_mode='residual')
    out3 = jax.block_until_ready(out3)
    ref3 = _reference(x3.astype(jnp.float32), enc3.astype(jnp.float32),
                      w3.astype(jnp.float32), b3.astype(jnp.float32), alpha=0.3)
    assert jnp.allclose(out3.astype(jnp.float32), ref3, atol=5e-2, rtol=5e-2), \
        "mismatch (test 3)"

    print("KERNEL_OK")
</pallas_src>

<mosaic_0001>
module attributes {stable_mosaic.version = 11 : i64} {
  func.func @_control_gate_kernel(%arg0: i32, %arg1: memref<16x32xf32, #tpu.memory_space<vmem>>, %arg2: memref<32x128xf32, #tpu.memory_space<vmem>>, %arg3: memref<1x128xf32, #tpu.memory_space<vmem>>, %arg4: memref<16x128xf32, #tpu.memory_space<vmem>>, %arg5: memref<16x128xf32, #tpu.memory_space<vmem>>) attributes {dimension_semantics = [#tpu.dimension_semantics<parallel>], iteration_bounds = array<i64: 1>, scalar_prefetch = 0 : i64, scratch_operands = 0 : i64, tpu.core_type = #tpu.core_type<tc>, window_params = [{transform_indices = @transform_0, window_bounds = array<i64: 16, 32>}, {pipeline_mode = #tpu.pipeline_mode<synchronous>, transform_indices = @transform_1, window_bounds = array<i64: 32, 128>}, {pipeline_mode = #tpu.pipeline_mode<synchronous>, transform_indices = @transform_2, window_bounds = array<i64: 1, 128>}, {transform_indices = @transform_3, window_bounds = array<i64: 16, 128>}, {transform_indices = @transform_4, window_bounds = array<i64: 16, 128>}]} {
    %c0 = arith.constant 0 : index
    %c0_0 = arith.constant 0 : index
    %0 = vector.load %arg1[%c0, %c0_0] : memref<16x32xf32, #tpu.memory_space<vmem>>, vector<16x32xf32>
    %c0_1 = arith.constant 0 : index
    %c0_2 = arith.constant 0 : index
    %1 = vector.load %arg2[%c0_1, %c0_2] : memref<32x128xf32, #tpu.memory_space<vmem>>, vector<32x128xf32>
    %cst = arith.constant dense<0.000000e+00> : vector<16x128xf32>
    %2 = tpu.matmul %0, %1, %cst {dimension_numbers = #tpu.dot_dimension_numbers<[1], [0], [0], [1], [0, 0, 1, 1], [], []>} : vector<16x32xf32>, vector<32x128xf32>, vector<16x128xf32> -> vector<16x128xf32>
    %c0_3 = arith.constant 0 : index
    %c0_4 = arith.constant 0 : index
    %3 = vector.load %arg3[%c0_3, %c0_4] : memref<1x128xf32, #tpu.memory_space<vmem>>, vector<1x128xf32>
    %4 = vector.broadcast %3 : vector<1x128xf32> to vector<16x128xf32>
    %5 = arith.addf %2, %4 : vector<16x128xf32>
    %6 = arith.negf %5 : vector<16x128xf32>
    %7 = math.exp %6 : vector<16x128xf32>
    %cst_5 = arith.constant 1.000000e+00 : f32
    %8 = vector.broadcast %cst_5 : f32 to vector<16x128xf32>
    %9 = arith.addf %8, %7 : vector<16x128xf32>
    %10 = arith.divf %8, %9 : vector<16x128xf32>
    %cst_6 = arith.constant 5.000000e-01 : f32
    %11 = vector.broadcast %cst_6 : f32 to vector<16x128xf32>
    %12 = arith.mulf %11, %10 : vector<16x128xf32>
    %cst_7 = arith.constant 5.000000e-01 : f32
    %13 = vector.broadcast %cst_7 : f32 to vector<16x128xf32>
    %14 = arith.addf %13, %12 : vector<16x128xf32>
    %c0_8 = arith.constant 0 : index
    %c0_9 = arith.constant 0 : index
    %15 = vector.load %arg4[%c0_8, %c0_9] : memref<16x128xf32, #tpu.memory_space<vmem>>, vector<16x128xf32>
    %16 = arith.mulf %15, %14 : vector<16x128xf32>
    %c0_10 = arith.constant 0 : index
    %c0_11 = arith.constant 0 : index
    %17 = vector.load %arg5[%c0_10, %c0_11] : memref<16x128xf32, #tpu.memory_space<vmem>>, vector<16x128xf32>
    tpu.vector_store %arg5[%c0_10, %c0_11], %16 {strides = array<i32>} : memref<16x128xf32, #tpu.memory_space<vmem>>, vector<16x128xf32>,
    return
  }
  func.func @transform_0(%arg0: i32) -> (i32, i32) {
    %c0_i32 = arith.constant 0 : i32
    %c0_i32_0 = arith.constant 0 : i32
    return %arg0, %c0_i32 : i32, i32
  }
  func.func @transform_1(%arg0: i32) -> (i32, i32) {
    %c0_i32 = arith.constant 0 : i32
    %c0_i32_0 = arith.constant 0 : i32
    %c0_i32_1 = arith.constant 0 : i32
    return %c0_i32, %c0_i32_0 : i32, i32
  }
  func.func @transform_2(%arg0: i32) -> (i32, i32) {
    %c0_i32 = arith.constant 0 : i32
    %c0_i32_0 = arith.constant 0 : i32
    %c0_i32_1 = arith.constant 0 : i32
    return %c0_i32, %c0_i32_0 : i32, i32
  }
  func.func @transform_3(%arg0: i32) -> (i32, i32) {
    %c0_i32 = arith.constant 0 : i32
    %c0_i32_0 = arith.constant 0 : i32
    return %arg0, %c0_i32 : i32, i32
  }
  func.func @transform_4(%arg0: i32) -> (i32, i32) {
    %c0_i32 = arith.constant 0 : i32
    %c0_i32_0 = arith.constant 0 : i32
    return %arg0, %c0_i32 : i32, i32
  }
}

</mosaic_0001>

<llo_original>
// kernel: tpu_custom_call.1
$region0: #{tpu_custom_call.1}
  #allocation0 [shape = 'u32[]', space=smem, size = 0x4, offset = 0x4, fixed_abs, tag = 'smem constant byte address 0x4 - core index']
  #allocation1 [shape = 'u32[72,128]{1,0:T(1,128)}', space=vmem, size = 0x9000, scoped, tag = 'internal scratch']
  %s0 = inlined_call_operand.hbm [shape: f32[16,32], index: 0, kind: input, shape index: {}]
  %s1 = inlined_call_operand.hbm [shape: f32[32,128], index: 1, kind: input, shape index: {}]
  %s2 = inlined_call_operand.vmem [shape: f32[1,128], index: 2, kind: input, shape index: {}]
  %s3 = inlined_call_operand.hbm [shape: f32[16,128], index: 3, kind: input, shape index: {}]
  %s4 = inlined_call_operand.hbm [shape: f32[16,128], index: 4, kind: output, shape index: {}]
  %s5 = sld [smem:[#allocation0]]
  $region38: #{tpu_custom_call.1} parent=0
    _
  %s7 = ssub.s32 1, %s5
  %s8 = scalar_select 0, %s7, %s5
  $region1: #{tpu_custom_call.1} parent=0
    #allocation2 [shape = 'u8[8192]{0}', space=vmem, size = 0x2000, scoped, tag = 'input window, operand 0, single buffered']
    #allocation3 [shape = 's32[1]{0}', space=sflag, size = 0x4, scoped, tag = 'scoped memory for tpu_custom_call.1']
    #allocation4 [shape = 's32[1]{0}', space=sflag, size = 0x4, scoped, tag = 'scoped memory for tpu_custom_call.1']
    #allocation5 [shape = 'u8[16384]{0}', space=vmem, size = 0x4000, scoped, tag = 'input window, operand 1, single buffered']
    #allocation6 [shape = 's32[1]{0}', space=sflag, size = 0x4, scoped, tag = 'scoped memory for tpu_custom_call.1']
    #allocation7 [shape = 'u8[8192]{0}', space=vmem, size = 0x2000, scoped, tag = 'input window, operand 3, single buffered']
    #allocation8 [shape = 'u8[8192]{0}', space=vmem, size = 0x2000, scoped, tag = 'output window, operand 0, single buffered']
    %9 = vsyncpa [#allocation3], 0
    %10 = vsyncpa [#allocation6], 0
    %11 = vsyncpa [#allocation4], 0
    // Predicated region
    $region2: #{tpu_custom_call.1} parent=1 // pred_check
      _
    $region3: #{tpu_custom_call.1} parent=1 // pred_check_branch
      %13 = sbr.rel (0) target = $region5
    $region4: #{tpu_custom_call.1} parent=1 // pred_region
      %15 = vsyncadd [#allocation3], 0
      %s16 = sshll.u32 %s0, 4
      %s17 = int_to_ptr.hbm [resolvable:$true] %s16
      %s18 = sshll.u32 [#allocation2], 4
      %s19 = int_to_ptr.vmem [resolvable:$true] %s18
      %24 = dma.hbm_to_vmem [thread:$0]  %s17, 256, %s19, [#allocation3], 128, 128, 8
    $region5: #{tpu_custom_call.1} parent=1 // pred_fallthru
      _
    // Predicated region
    $region6: #{tpu_custom_call.1} parent=1 // pred_check
      _
    $region7: #{tpu_custom_call.1} parent=1 // pred_check_branch
      %26 = sbr.rel (0) target = $region9
    $region8: #{tpu_custom_call.1} parent=1 // pred_region
      %28 = vsyncadd [#allocation6], 0
      %s29 = sshll.u32 %s1, 4
      %s30 = int_to_ptr.hbm [resolvable:$true] %s29
      %s31 = sshll.u32 [#allocation5], 4
      %s32 = int_to_ptr.vmem [resolvable:$true] %s31
      %37 = dma.hbm_to_vmem [thread:$0]  %s30, 512, %s32, [#allocation6], 128, 128, 8
    $region9: #{tpu_custom_call.1} parent=1 // pred_fallthru
      _
    // Predicated region
    $region10: #{tpu_custom_call.1} parent=1 // pred_check
      _
    $region11: #{tpu_custom_call.1} parent=1 // pred_check_branch
      %39 = sbr.rel (0) target = $region13
    $region12: #{tpu_custom_call.1} parent=1 // pred_region
      _
    $region13: #{tpu_custom_call.1} parent=1 // pred_fallthru
      _
    // Predicated region
    $region14: #{tpu_custom_call.1} parent=1 // pred_check
      _
    $region15: #{tpu_custom_call.1} parent=1 // pred_check_branch
      %41 = sbr.rel (0) target = $region17
    $region16: #{tpu_custom_call.1} parent=1 // pred_region
      %43 = vsyncadd [#allocation6], 0
      %s44 = sshll.u32 %s3, 4
      %s45 = int_to_ptr.hbm [resolvable:$true] %s44
      %s46 = sshll.u32 [#allocation7], 4
      %s47 = int_to_ptr.vmem [resolvable:$true] %s46
      %52 = dma.hbm_to_vmem [thread:$0]  %s45, 256, %s47, [#allocation6], 128, 128, 8
    $region17: #{tpu_custom_call.1} parent=1 // pred_fallthru
      _
    // Predicated region
    $region18: #{tpu_custom_call.1} parent=1 // pred_check
      _
    $region19: #{tpu_custom_call.1} parent=1 // pred_check_branch
      %54 = sbr.rel (0) target = $region21
    $region20: #{tpu_custom_call.1} parent=1 // pred_region
      %56 = dma.done [#allocation3], 256
    $region21: #{tpu_custom_call.1} parent=1 // pred_fallthru
      _
    // Predicated region
    $region22: #{tpu_custom_call.1} parent=1 // pred_check
      _
    $region23: #{tpu_custom_call.1} parent=1 // pred_check_branch
      %58 = sbr.rel (0) target = $region25
    $region24: #{tpu_custom_call.1} parent=1 // pred_region
      %60 = dma.done [#allocation6], 512
    $region25: #{tpu_custom_call.1} parent=1 // pred_fallthru
      _
    // Predicated region
    $region26: #{tpu_custom_call.1} parent=1 // pred_check
      _
    $region27: #{tpu_custom_call.1} parent=1 // pred_check_branch
      %62 = sbr.rel (0) target = $region29
    $region28: #{tpu_custom_call.1} parent=1 // pred_region
      %64 = dma.done [#allocation6], 256
    $region29: #{tpu_custom_call.1} parent=1 // pred_fallthru
      _
    %v65 = vld [vmem:[#allocation2] sm:$0xff]
    %v66 = vld [vmem:[#allocation2 + $0x8] sm:$0xff]
    %v67 = vld [vmem:[#allocation5] sm:$0xff]
    %v68 = vld [vmem:[#allocation5 + $0x8] sm:$0xff]
    %v69 = vld [vmem:[#allocation5 + $0x10] sm:$0xff]
    %v70 = vld [vmem:[#allocation5 + $0x18] sm:$0xff]
    %v71 = vld [vmem:[%s2] sm:$0x1]
    %v73 = vperm.slane %v71, 0
    %vm75 = vcmask 261120
    %v77 = vsel %vm75, %v65, 0
    %v80 = vsel %vm75, %v66, 0
    %82 = vmatpush.msra.mxu0 0.0
    %83 = vmatpush.msra.mxu0 0.0
    %84 = vmatpush.msra.mxu0 0.0
    %85 = vmatpush.msra.mxu0 0.0
    %86 = vmatpush.msra.mxu0 0.0
    %87 = vmatpush.msra.mxu0 0.0
    %88 = vmatpush.msra.mxu0 0.0
    %89 = vmatpush.msra.mxu0 0.0
    %90 = vmatpush.msra.mxu0 0.0
    %91 = vmatpush.msra.mxu0 0.0
    %92 = vmatpush.msra.mxu0 0.0
    %93 = vmatpush.msra.mxu0 0.0
    %94 = vmatpush.msra.mxu0 %v70
    %95 = vmatpush.msra.mxu0 %v69
    %96 = vmatpush.msra.mxu0 %v68
    %97 = vmatpush.msra.mxu0 %v67
    %98 = vmatmul.f32.gmra.mxu0 %v77
    %v99 = vpop.f32.mrf.mxu0
    %v100 = vadd.f32 %v73, %v99
    %101 = vmatmul.f32.gmra.mxu0 %v80
    %v102 = vpop.f32.mrf.mxu0
    %v103 = vadd.f32 %v73, %v102
    %104 = vdwg.mxu0
    %v105 = vxor.u32 %v100, 2147483648
    %v106 = vxor.u32 %v103, 2147483648
    %v107 = vmul.f32 %v105, 1.442695
    %v108 = vpow.pop %v107
    %v109 = vmul.f32 %v106, 1.442695
    %v110 = vpow.pop %v109
    %v111 = vadd.f32 %v108, 1.0
    %v112 = vadd.f32 %v110, 1.0
    %v113 = vrcp.pop %v111
    %v114 = vmul.f32 %v111, %v113
    %v115 = vsub.f32 1.0, %v114
    %v116 = vmul.f32 %v113, %v115
    %v117 = vadd.f32 %v113, %v116
    %vm118 = vweird.f32 %v111
    %vm119 = vweird.f32 %v113
    %vm120 = vmor %vm118, %vm119
    %v121 = vsel %vm120, %v113, %v117
    %v122 = vand.u32 2147483647, %v111
    %vm123 = vcmp.eq.f32.partialorder %v122, 8.507059e+37
    %v124 = vand.u32 %v111, 2147483648
    %v125 = vor.u32 1.1754944e-38, %v124
    %v126 = vsel %vm123, %v125, %v121
    %v127 = vmul.f32 1.0, %v126
    %v128 = vrcp.pop %v112
    %v129 = vmul.f32 %v112, %v128
    %v130 = vsub.f32 1.0, %v129
    %v131 = vmul.f32 %v128, %v130
    %v132 = vadd.f32 %v128, %v131
    %vm133 = vweird.f32 %v112
    %vm134 = vweird.f32 %v128
    %vm135 = vmor %vm133, %vm134
    %v136 = vsel %vm135, %v128, %v132
    %v137 = vand.u32 2147483647, %v112
    %vm138 = vcmp.eq.f32.partialorder %v137, 8.507059e+37
    %v139 = vand.u32 %v112, 2147483648
    %v140 = vor.u32 1.1754944e-38, %v139
    %v141 = vsel %vm138, %v140, %v136
    %v142 = vmul.f32 1.0, %v141
    %v143 = vmul.f32 %v127, 0.5
    %v144 = vmul.f32 %v142, 0.5
    %v145 = vadd.f32 %v143, 0.5
    %v146 = vadd.f32 %v144, 0.5
    %v147 = vld [vmem:[#allocation7] sm:$0xff]
    %v148 = vld [vmem:[#allocation7 + $0x8] sm:$0xff]
    %v149 = vmul.f32 %v147, %v145
    %v150 = vmul.f32 %v148, %v146
    %151 = vst [vmem:[#allocation8] sm:$0xff] %v149
    %152 = vst [vmem:[#allocation8 + $0x8] sm:$0xff] %v150
    // Predicated region
    $region30: #{tpu_custom_call.1} parent=1 // pred_check
      _
    $region31: #{tpu_custom_call.1} parent=1 // pred_check_branch
      %154 = sbr.rel (0) target = $region33
    $region32: #{tpu_custom_call.1} parent=1 // pred_region
      %156 = vsyncadd [#allocation4], 0
      %s157 = sshll.u32 [#allocation8], 4
      %s158 = int_to_ptr.vmem [resolvable:$true] %s157
      %s159 = sshll.u32 %s4, 4
      %s160 = int_to_ptr.hbm [resolvable:$true] %s159
      %165 = dma.vmem_to_hbm [thread:$0]  %s158, 256, %s160, [#allocation4], 128, 128, 8
    $region33: #{tpu_custom_call.1} parent=1 // pred_fallthru
      _
    // Predicated region
    $region34: #{tpu_custom_call.1} parent=1 // pred_check
      _
    $region35: #{tpu_custom_call.1} parent=1 // pred_check_branch
      %167 = sbr.rel (0) target = $region37
    $region36: #{tpu_custom_call.1} parent=1 // pred_region
      %169 = dma.done [#allocation4], 256
    $region37: #{tpu_custom_call.1} parent=1 // pred_fallthru
      _
    %170 = vsyncpa [#allocation3], 1
    %171 = vsyncpa [#allocation6], 1
    %172 = vsyncpa [#allocation4], 1

</llo_original>
